<compile_context>
chip_gen: v6e
topology: v6e:2x2x1
jax: 0.10.0
libtpu: 0.0.40
codegen_flags: <defaults>
</compile_context>

<pallas_src>
import functools

import jax
import jax.numpy as jnp
import numpy as np
from jax.experimental import pallas as pl
from jax.experimental.pallas import tpu as pltpu

_BN_EPS = 1e-5


# ----------------------------------------------------------------------------- kernels


def _bn_relu_epilogue(z, gamma, beta, true_n, out_dtype):
    """Training-mode BatchNorm1d + ReLU over the batch axis of a resident f32 tile.

    Padded rows of z are exactly zero (zero x rows, no bias), so the mean is exact
    when divided by the true batch size; the centered variance pass masks padded
    rows out, which is both exact and free of sum/sumsq cancellation.
    """
    inv_n = 1.0 / true_n
    mean = jnp.sum(z, axis=0, keepdims=True) * inv_n            # [1, td]
    diff = z - mean
    if true_n != z.shape[0]:                                    # trace-time constant
        row = jax.lax.broadcasted_iota(jnp.int32, z.shape, 0)
        diff = jnp.where(row < true_n, diff, 0.0)
    var = jnp.sum(diff * diff, axis=0, keepdims=True) * inv_n   # [1, td], biased var
    scale = gamma * jax.lax.rsqrt(var + _BN_EPS)                # EUP rsqrt
    shift = beta - mean * scale
    # Single fused pass over the big tile: scale, shift, ReLU.
    return jnp.maximum(z * scale + shift, 0.0).astype(out_dtype)


def _fullk_kernel(x_ref, w_ref, gamma_ref, beta_ref, o_ref, *, true_n):
    # Whole contraction dim in one MXU call; BN + ReLU fused in the same pass.
    z = jnp.dot(x_ref[...], w_ref[...], preferred_element_type=jnp.float32)
    o_ref[...] = _bn_relu_epilogue(z, gamma_ref[...], beta_ref[...], true_n, o_ref.dtype)


def _ktiled_kernel(x_ref, w_ref, gamma_ref, beta_ref, o_ref, *, true_n):
    # K-tiled fallback: accumulate directly into the resident f32 output block
    # (its block index is constant across k), no extra VMEM scratch.
    k = pl.program_id(1)

    @pl.when(k == 0)
    def _():
        o_ref[...] = jnp.zeros_like(o_ref)

    o_ref[...] += jnp.dot(x_ref[...], w_ref[...], preferred_element_type=jnp.float32)

    @pl.when(k == pl.num_programs(1) - 1)
    def _():
        z = o_ref[...]
        o_ref[...] = _bn_relu_epilogue(z, gamma_ref[...], beta_ref[...], true_n, o_ref.dtype)


# ----------------------------------------------------------------------------- helpers


def _round_up(v, m):
    return ((v + m - 1) // m) * m


def _device_vmem_bytes():
    """Physical VMEM per TensorCore (128 MiB v5e/v6e, 64 MiB v7x); safe fallback."""
    try:
        info = pltpu.get_tpu_info()
        cap = getattr(info, "vmem_capacity_bytes", None)
        if cap:
            return int(cap)
    except Exception:
        pass
    try:
        kind = jax.devices()[0].device_kind.lower()
        return (64 << 20) if ("v7" in kind or "7x" in kind) else (128 << 20)
    except Exception:
        return 64 << 20  # conservative


def _num_tensorcores():
    try:
        kind = jax.devices()[0].device_kind.lower()
        return 2 if ("v7" in kind or "7x" in kind) else 1
    except Exception:
        return 1


def _pick_td(d_out_p, want_multi_tile):
    # Prefer wide (lane-dense) output tiles; on a 2-TC chip prefer >= 2 D_out tiles
    # so the "parallel" axis can be sharded across both TensorCores.
    for c in (512, 256, 128):
        if d_out_p % c == 0:
            if want_multi_tile and d_out_p // c < 2 and c != 128:
                continue
            return c
    return 128


# ----------------------------------------------------------------------------- wrapper


@functools.partial(jax.jit, static_argnames=("matmul_dtype", "out_dtype"))
def fully_connected_block(x, w_t, gamma, beta,
                          matmul_dtype=jnp.bfloat16, out_dtype=jnp.float32):
    """ReLU(BatchNorm1d_train(x @ w_t)) with a fused scale/shift+ReLU epilogue.

    x:     [N, D_in]
    w_t:   [D_in, D_out]  (nn.Linear weight, pre-transposed)
    gamma: [1, D_out]     (BN weight)
    beta:  [1, D_out]     (BN bias)

    The Linear bias is omitted on purpose: BN's batch-mean subtraction cancels it
    exactly, so it would be wasted VPU work + DMA.
    """
    n, d_in = x.shape
    d_out = w_t.shape[1]
    mm_dtype = jnp.dtype(matmul_dtype)
    out_dtype = jnp.dtype(out_dtype)
    mm_bytes = mm_dtype.itemsize

    # Per-generation VMEM budget: ~100 MiB on v5e/v6e (128 MiB), ~50 MiB on v7x (64 MiB).
    vmem_cap = _device_vmem_bytes()
    vmem_limit = min(int(vmem_cap * 0.78), 100 << 20)
    budget = int(vmem_limit * 0.85)  # headroom for compiler-internal scratch

    d_out_p = _round_up(d_out, 128)
    td = _pick_td(d_out_p, _num_tensorcores() >= 2)

    # Zero-row padding of N: unmasked sublane feeds/stores; stats stay exact because
    # the kernel divides by the true N and masks padded rows in the variance pass.
    n_p = _round_up(n, 16)

    x = x.astype(mm_dtype)
    w_t = w_t.astype(mm_dtype)
    g_p = jnp.pad(gamma.astype(jnp.float32).reshape(1, d_out),
                  ((0, 0), (0, d_out_p - d_out)))
    b_p = jnp.pad(beta.astype(jnp.float32).reshape(1, d_out),
                  ((0, 0), (0, d_out_p - d_out)))
    # Zero-padded gamma/beta => padded output columns are exactly 0 (z=0 -> var=0 ->
    # scale=0, shift=0), no NaN/Inf, sliced off below.

    def est_bytes(k_block, td_block, out_itemsize):
        # Steady-state footprint: double-buffered x & w blocks + out block(s) + params.
        return (2 * (n_p * k_block + k_block * td_block) * mm_bytes
                + 2 * n_p * td_block * out_itemsize
                + 4 * td_block * 4)

    # ---------------- full-K fast path: D_in resident, x DMA'd exactly once ----------
    if est_bytes(d_in, td, out_dtype.itemsize) <= budget:
        x_p = jnp.pad(x, ((0, n_p - n), (0, 0)))          # no D_in padding copy needed
        w_p = jnp.pad(w_t, ((0, 0), (0, d_out_p - d_out)))
        out = pl.pallas_call(
            functools.partial(_fullk_kernel, true_n=n),
            out_shape=jax.ShapeDtypeStruct((n_p, d_out_p), out_dtype),
            grid_spec=pltpu.PrefetchScalarGridSpec(
                num_scalar_prefetch=0,
                grid=(d_out_p // td,),
                in_specs=[
                    pl.BlockSpec((n_p, d_in), lambda j: (0, 0)),   # constant -> fetched once
                    pl.BlockSpec((d_in, td), lambda j: (0, j)),
                    pl.BlockSpec((1, td), lambda j: (0, j)),
                    pl.BlockSpec((1, td), lambda j: (0, j)),
                ],
                out_specs=pl.BlockSpec((n_p, td), lambda j: (0, j)),
            ),
            compiler_params=pltpu.CompilerParams(
                dimension_semantics=("parallel",),
                vmem_limit_bytes=vmem_limit,
            ),
        )(x_p, w_p, g_p, b_p)
        return out[:n, :d_out]

    # ---------------- K-tiled fallback: (D_out "parallel") x (K "arbitrary") ---------
    d_in_p = _round_up(d_in, 128)
    tk = next(c for c in (512, 256, 128) if d_in_p % c == 0)
    while est_bytes(tk, td, 4) > budget and tk > 128:
        tk //= 2
    while est_bytes(tk, td, 4) > budget and td > 128:
        td //= 2
    if est_bytes(tk, td, 4) > budget:
        # TODO(synk): for very large N, tile N with a two-pass BN (accumulate per-column
        # sum/sumsq across N tiles, then a second scale/shift+ReLU pass) instead of
        # keeping the whole batch resident.
        raise ValueError(f"batch size {n} too large for single-pass batch-norm kernel")

    x_p = jnp.pad(x, ((0, n_p - n), (0, d_in_p - d_in)))
    w_p = jnp.pad(w_t, ((0, d_in_p - d_in), (0, d_out_p - d_out)))
    out = pl.pallas_call(
        functools.partial(_ktiled_kernel, true_n=n),
        out_shape=jax.ShapeDtypeStruct((n_p, d_out_p), jnp.float32),
        grid_spec=pltpu.PrefetchScalarGridSpec(
            num_scalar_prefetch=0,
            grid=(d_out_p // td, d_in_p // tk),
            in_specs=[
                pl.BlockSpec((n_p, tk), lambda j, k: (0, k)),
                pl.BlockSpec((tk, td), lambda j, k: (k, j)),
                pl.BlockSpec((1, td), lambda j, k: (0, j)),
                pl.BlockSpec((1, td), lambda j, k: (0, j)),
            ],
            out_specs=pl.BlockSpec((n_p, td), lambda j, k: (0, j)),
        ),
        compiler_params=pltpu.CompilerParams(
            dimension_semantics=("parallel", "arbitrary"),
            vmem_limit_bytes=vmem_limit,
        ),
    )(x_p, w_p, g_p, b_p)
    out = out[:n, :d_out]
    if out_dtype != jnp.float32:
        # TODO(synk): K-tiled path accumulates in-place in f32; downcast afterwards.
        out = out.astype(out_dtype)
    return out


# ----------------------------------------------------------------------------- test


if __name__ == "__main__":
    # Small deterministic shapes consistent with the module (MLP block).
    N, D_IN, D_OUT = 8, 32, 16

    key = jax.random.PRNGKey(0)
    kx, kw, kb, kg, kbe = jax.random.split(key, 5)

    x = jax.random.normal(kx, (N, D_IN), dtype=jnp.float32)
    bound = 1.0 / np.sqrt(D_IN)
    w = jax.random.uniform(kw, (D_OUT, D_IN), minval=-bound, maxval=bound,
                           dtype=jnp.float32)
    b = jax.random.uniform(kb, (1, D_OUT), minval=-bound, maxval=bound,
                           dtype=jnp.float32)
    gamma = 1.0 + 0.1 * jax.random.normal(kg, (1, D_OUT), dtype=jnp.float32)
    beta = 0.1 * jax.random.normal(kbe, (1, D_OUT), dtype=jnp.float32)

    w_t = w.T  # pre-transpose so the kernel does x @ W_t

    out = fully_connected_block(x, w_t, gamma, beta)          # default bf16 matmul
    out = jax.block_until_ready(out)

    # Reference: faithful PyTorch math *including* the Linear bias (it cancels exactly
    # under training-mode BN), with x/w rounded to bf16 to match the MXU operands.
    x_r = np.asarray(x.astype(jnp.bfloat16).astype(jnp.float32), dtype=np.float64)
    w_r = np.asarray(w.astype(jnp.bfloat16).astype(jnp.float32), dtype=np.float64)
    z = x_r @ w_r.T + np.asarray(b, dtype=np.float64)
    mean = z.mean(axis=0, keepdims=True)
    var = ((z - mean) ** 2).mean(axis=0, keepdims=True)
    z_hat = (z - mean) / np.sqrt(var + _BN_EPS)
    ref = np.maximum(z_hat * np.asarray(gamma, dtype=np.float64)
                     + np.asarray(beta, dtype=np.float64), 0.0)

    np.testing.assert_allclose(np.asarray(out, dtype=np.float64), ref,
                               rtol=2e-3, atol=2e-3)

    print("KERNEL_OK")
</pallas_src>

<mosaic_0001>
module attributes {stable_mosaic.version = 11 : i64} {
  func.func @_fullk_kernel(%arg0: i32, %arg1: memref<16x32xbf16, #tpu.memory_space<vmem>>, %arg2: memref<32x128xbf16, #tpu.memory_space<vmem>>, %arg3: memref<1x128xf32, #tpu.memory_space<vmem>>, %arg4: memref<1x128xf32, #tpu.memory_space<vmem>>, %arg5: memref<16x128xf32, #tpu.memory_space<vmem>>) attributes {dimension_semantics = [#tpu.dimension_semantics<parallel>], iteration_bounds = array<i64: 1>, scalar_prefetch = 0 : i64, scratch_operands = 0 : i64, tpu.core_type = #tpu.core_type<tc>, window_params = [{pipeline_mode = #tpu.pipeline_mode<synchronous>, transform_indices = @transform_0, window_bounds = array<i64: 16, 32>}, {transform_indices = @transform_1, window_bounds = array<i64: 32, 128>}, {transform_indices = @transform_2, window_bounds = array<i64: 1, 128>}, {transform_indices = @transform_3, window_bounds = array<i64: 1, 128>}, {transform_indices = @transform_4, window_bounds = array<i64: 16, 128>}]} {
    %c0 = arith.constant 0 : index
    %c0_0 = arith.constant 0 : index
    %0 = vector.load %arg1[%c0, %c0_0] : memref<16x32xbf16, #tpu.memory_space<vmem>>, vector<16x32xbf16>
    %c0_1 = arith.constant 0 : index
    %c0_2 = arith.constant 0 : index
    %1 = vector.load %arg2[%c0_1, %c0_2] : memref<32x128xbf16, #tpu.memory_space<vmem>>, vector<32x128xbf16>
    %cst = arith.constant dense<0.000000e+00> : vector<16x128xf32>
    %2 = tpu.matmul %0, %1, %cst {dimension_numbers = #tpu.dot_dimension_numbers<[1], [0], [0], [1], [0, 0, 1, 1], [], []>} : vector<16x32xbf16>, vector<32x128xbf16>, vector<16x128xf32> -> vector<16x128xf32>
    %c0_3 = arith.constant 0 : index
    %c0_4 = arith.constant 0 : index
    %3 = vector.load %arg3[%c0_3, %c0_4] : memref<1x128xf32, #tpu.memory_space<vmem>>, vector<1x128xf32>
    %c0_5 = arith.constant 0 : index
    %c0_6 = arith.constant 0 : index
    %4 = vector.load %arg4[%c0_5, %c0_6] : memref<1x128xf32, #tpu.memory_space<vmem>>, vector<1x128xf32>
    %cst_7 = arith.constant dense<0.000000e+00> : vector<128xf32>
    %5 = vector.multi_reduction <add>, %2, %cst_7 [0] : vector<16x128xf32> to vector<128xf32>
    %6 = vector.shape_cast %5 : vector<128xf32> to vector<1x128xf32>
    %cst_8 = arith.constant 1.250000e-01 : f32
    %7 = vector.broadcast %cst_8 : f32 to vector<1x128xf32>
    %8 = arith.mulf %6, %7 : vector<1x128xf32>
    %9 = vector.broadcast %8 : vector<1x128xf32> to vector<16x128xf32>
    %10 = arith.subf %2, %9 : vector<16x128xf32>
    %11 = tpu.iota {dimensions = array<i32: 0>} : vector<16x128xi32>
    %c8_i32 = arith.constant 8 : i32
    %12 = vector.broadcast %c8_i32 : i32 to vector<16x128xi32>
    %13 = arith.cmpi slt, %11, %12 : vector<16x128xi32>
    %cst_9 = arith.constant 0.000000e+00 : f32
    %14 = vector.broadcast %cst_9 : f32 to vector<16x128xf32>
    %15 = arith.select %13, %10, %14 : vector<16x128xi1>, vector<16x128xf32>
    %16 = arith.mulf %15, %15 : vector<16x128xf32>
    %cst_10 = arith.constant dense<0.000000e+00> : vector<128xf32>
    %17 = vector.multi_reduction <add>, %16, %cst_10 [0] : vector<16x128xf32> to vector<128xf32>
    %18 = vector.shape_cast %17 : vector<128xf32> to vector<1x128xf32>
    %cst_11 = arith.constant 1.250000e-01 : f32
    %19 = vector.broadcast %cst_11 : f32 to vector<1x128xf32>
    %20 = arith.mulf %18, %19 : vector<1x128xf32>
    %cst_12 = arith.constant 9.99999974E-6 : f32
    %21 = vector.broadcast %cst_12 : f32 to vector<1x128xf32>
    %22 = arith.addf %20, %21 : vector<1x128xf32>
    %23 = math.rsqrt %22 : vector<1x128xf32>
    %24 = arith.mulf %3, %23 : vector<1x128xf32>
    %25 = arith.mulf %8, %24 : vector<1x128xf32>
    %26 = arith.subf %4, %25 : vector<1x128xf32>
    %27 = vector.broadcast %24 : vector<1x128xf32> to vector<16x128xf32>
    %28 = arith.mulf %2, %27 : vector<16x128xf32>
    %29 = vector.broadcast %26 : vector<1x128xf32> to vector<16x128xf32>
    %30 = arith.addf %28, %29 : vector<16x128xf32>
    %cst_13 = arith.constant 0.000000e+00 : f32
    %31 = vector.broadcast %cst_13 : f32 to vector<16x128xf32>
    %32 = arith.maximumf %30, %31 : vector<16x128xf32>
    %c0_14 = arith.constant 0 : index
    %c0_15 = arith.constant 0 : index
    %33 = vector.load %arg5[%c0_14, %c0_15] : memref<16x128xf32, #tpu.memory_space<vmem>>, vector<16x128xf32>
    tpu.vector_store %arg5[%c0_14, %c0_15], %32 {strides = array<i32>} : memref<16x128xf32, #tpu.memory_space<vmem>>, vector<16x128xf32>,
    return
  }
  func.func @transform_0(%arg0: i32) -> (i32, i32) {
    %c0_i32 = arith.constant 0 : i32
    %c0_i32_0 = arith.constant 0 : i32
    %c0_i32_1 = arith.constant 0 : i32
    return %c0_i32, %c0_i32_0 : i32, i32
  }
  func.func @transform_1(%arg0: i32) -> (i32, i32) {
    %c0_i32 = arith.constant 0 : i32
    %c0_i32_0 = arith.constant 0 : i32
    return %c0_i32, %arg0 : i32, i32
  }
  func.func @transform_2(%arg0: i32) -> (i32, i32) {
    %c0_i32 = arith.constant 0 : i32
    %c0_i32_0 = arith.constant 0 : i32
    return %c0_i32, %arg0 : i32, i32
  }
  func.func @transform_3(%arg0: i32) -> (i32, i32) {
    %c0_i32 = arith.constant 0 : i32
    %c0_i32_0 = arith.constant 0 : i32
    return %c0_i32, %arg0 : i32, i32
  }
  func.func @transform_4(%arg0: i32) -> (i32, i32) {
    %c0_i32 = arith.constant 0 : i32
    %c0_i32_0 = arith.constant 0 : i32
    return %c0_i32, %arg0 : i32, i32
  }
}

</mosaic_0001>

<llo_original>
// kernel: fully_connected_block.1
$region0: #{fully_connected_block.1}
  #allocation0 [shape = 'u32[]', space=smem, size = 0x4, offset = 0x4, fixed_abs, tag = 'smem constant byte address 0x4 - core index']
  #allocation1 [shape = 'u32[144,128]{1,0:T(1,128)}', space=vmem, size = 0x12000, scoped, tag = 'internal scratch']
  %s0 = inlined_call_operand.vmem [shape: bf16[16,32], index: 0, kind: input, shape index: {}]
  %s1 = inlined_call_operand.vmem [shape: bf16[32,128], index: 1, kind: input, shape index: {}]
  %s2 = inlined_call_operand.vmem [shape: f32[1,128], index: 2, kind: input, shape index: {}]
  %s3 = inlined_call_operand.vmem [shape: f32[1,128], index: 3, kind: input, shape index: {}]
  %s4 = inlined_call_operand.vmem [shape: f32[16,128], index: 4, kind: output, shape index: {}]
  %s5 = sld [smem:[#allocation0]]
  $region26: #{fully_connected_block.1} parent=0
    _
  %s7 = ssub.s32 1, %s5
  %s8 = scalar_select 0, %s7, %s5
  // Predicated region
  $region2: #{fully_connected_block.1} parent=0 // pred_check
    _
  $region3: #{fully_connected_block.1} parent=0 // pred_check_branch
    %10 = sbr.rel (0) target = $region5
  $region4: #{fully_connected_block.1} parent=0 // pred_region
    _
  $region5: #{fully_connected_block.1} parent=0 // pred_fallthru
    _
  // Predicated region
  $region6: #{fully_connected_block.1} parent=0 // pred_check
    _
  $region7: #{fully_connected_block.1} parent=0 // pred_check_branch
    %12 = sbr.rel (0) target = $region9
  $region8: #{fully_connected_block.1} parent=0 // pred_region
    _
  $region9: #{fully_connected_block.1} parent=0 // pred_fallthru
    _
  // Predicated region
  $region10: #{fully_connected_block.1} parent=0 // pred_check
    _
  $region11: #{fully_connected_block.1} parent=0 // pred_check_branch
    %14 = sbr.rel (0) target = $region13
  $region12: #{fully_connected_block.1} parent=0 // pred_region
    _
  $region13: #{fully_connected_block.1} parent=0 // pred_fallthru
    _
  // Predicated region
  $region14: #{fully_connected_block.1} parent=0 // pred_check
    _
  $region15: #{fully_connected_block.1} parent=0 // pred_check_branch
    %16 = sbr.rel (0) target = $region17
  $region16: #{fully_connected_block.1} parent=0 // pred_region
    _
  $region17: #{fully_connected_block.1} parent=0 // pred_fallthru
    _
  %v18 = vld [vmem:[%s0] sm:$0xf]
  %v19 = vld [vmem:[%s0 + $0x4] sm:$0xf]
  %v20 = vld [vmem:[%s1] sm:$0xf]
  %v21 = vld [vmem:[%s1 + $0x4] sm:$0xf]
  %v22 = vld [vmem:[%s1 + $0x8] sm:$0xf]
  %v23 = vld [vmem:[%s1 + $0xc] sm:$0xf]
  %v26 = vunpack.c.l.b16 %v18
  %v27 = vunpack.c.l.b16 %v19
  %v28 = vpack.c.b16 %v27, %v26
  %v33 = vunpack.c.l.b16 %v20
  %v34 = vunpack.c.l.b16 %v21
  %v35 = vunpack.c.l.b16 %v22
  %v36 = vunpack.c.l.b16 %v23
  %v37 = vpack.c.b16 %v34, %v33
  %v38 = vpack.c.b16 %v36, %v35
  %vm41 = vcmask 261120
  %v43 = vsel %vm41, %v28, 0
  %45 = vmatprep.subr.bf16.mxu0 0
  %46 = vmatpush1.bf16.msra.mxu0 0
  %47 = vmatprep.subr.bf16.mxu0 0
  %48 = vmatpush1.bf16.msra.mxu0 0
  %49 = vmatprep.subr.bf16.mxu0 0
  %50 = vmatpush1.bf16.msra.mxu0 0
  %51 = vmatprep.subr.bf16.mxu0 0
  %52 = vmatpush1.bf16.msra.mxu0 0
  %53 = vmatprep.subr.bf16.mxu0 0
  %54 = vmatpush1.bf16.msra.mxu0 0
  %55 = vmatprep.subr.bf16.mxu0 0
  %56 = vmatpush1.bf16.msra.mxu0 0
  %57 = vmatprep.subr.bf16.mxu0 0
  %58 = vmatpush1.bf16.msra.mxu0 %v38
  %59 = vmatprep.subr.bf16.mxu0 0
  %60 = vmatpush1.bf16.msra.mxu0 %v37
  %61 = vmatprep.subr.bf16.mxu0 0
  %62 = vmatpush2.bf16.msra.mxu0 0
  %63 = vmatprep.subr.bf16.mxu0 0
  %64 = vmatpush2.bf16.msra.mxu0 0
  %65 = vmatprep.subr.bf16.mxu0 0
  %66 = vmatpush2.bf16.msra.mxu0 0
  %67 = vmatprep.subr.bf16.mxu0 0
  %68 = vmatpush2.bf16.msra.mxu0 0
  %69 = vmatprep.subr.bf16.mxu0 0
  %70 = vmatpush2.bf16.msra.mxu0 0
  %71 = vmatprep.subr.bf16.mxu0 0
  %72 = vmatpush2.bf16.msra.mxu0 0
  %73 = vmatprep.subr.bf16.mxu0 0
  %74 = vmatpush2.bf16.msra.mxu0 0
  %75 = vmatprep.subr.bf16.mxu0 0
  %76 = vmatpush2.bf16.msra.mxu0 0
  %77 = vmatprep.mubr.bf16.mxu0 0
  %78 = vmatmul.mubr.bf16.gmra.mxu0 %v43
  %v79 = vpop.f32.mrf.mxu0
  %v80 = vadd.f32 0.0, %v79
  %v81 = vpop.f32.mrf.mxu0
  %v82 = vpop.f32.mrf.mxu0
  %v83 = vadd.f32 0.0, %v82
  %v84 = vpop.f32.mrf.mxu0
  %85 = vdwg.mxu0
  %v86 = vld [vmem:[%s2] sm:$0x1]
  %v87 = vld [vmem:[%s3] sm:$0x1]
  %v88 = vadd.f32 %v80, %v83
  %v89 = vrot.slane %v88, 4
  %v90 = vadd.f32 %v88, %v89
  %v91 = vrot.slane %v90, 2
  %v92 = vadd.f32 %v90, %v91
  %v93 = vrot.slane %v92, 1
  %v94 = vadd.f32 %v92, %v93
  %v95 = vmul.f32 %v94, 0.125
  %v96 = vsub.f32 %v80, %v95
  %v97 = vsub.f32 %v83, %v95
  %v98 = vlaneseq
  %v99 = vshrl.u32 %v98, 7
  %v100 = vadd.s32 %v99, 8
  %vm101 = vcmp.lt.s32.totalorder %v99, 8
  %vm102 = vcmp.lt.s32.totalorder %v100, 8
  %v103 = vsel %vm101, %v96, 0.0
  %v104 = vsel %vm102, %v97, 0.0
  %v105 = vmul.f32 %v103, %v103
  %v106 = vmul.f32 %v104, %v104
  %v107 = vadd.f32 %v105, %v106
  %v108 = vrot.slane %v107, 4
  %v109 = vadd.f32 %v107, %v108
  %v110 = vrot.slane %v109, 2
  %v111 = vadd.f32 %v109, %v110
  %v112 = vrot.slane %v111, 1
  %v113 = vadd.f32 %v111, %v112
  %v114 = vmul.f32 %v113, 0.125
  %v115 = vadd.f32 %v114, 1e-05
  %v116 = vrsqrt.pop %v115
  %v117 = vmul.f32 %v86, %v116
  %v118 = vmul.f32 %v95, %v117
  %v119 = vsub.f32 %v87, %v118
  %v121 = vlaneseq
  %v122 = vshrl.u32 %v121, 7
  %v123 = vsub.s32 0, %v122
  %v124 = vrot.slane %v117, %v123
  %v126 = vmul.f32 %v80, %v124
  %v127 = vmul.f32 %v83, %v124
  %v129 = vlaneseq
  %v130 = vshrl.u32 %v129, 7
  %v131 = vsub.s32 0, %v130
  %v132 = vrot.slane %v119, %v131
  %v134 = vadd.f32 %v126, %v132
  %v135 = vadd.f32 %v127, %v132
  %v136 = vmax.f32 %v134, 0.0
  %v137 = vmax.f32 %v135, 0.0
  %138 = vst [vmem:[%s4] sm:$0xff] %v136
  %139 = vst [vmem:[%s4 + $0x8] sm:$0xff] %v137
  // Predicated region
  $region18: #{fully_connected_block.1} parent=0 // pred_check
    _
  $region19: #{fully_connected_block.1} parent=0 // pred_check_branch
    %141 = sbr.rel (0) target = $region21
  $region20: #{fully_connected_block.1} parent=0 // pred_region
    _
  $region21: #{fully_connected_block.1} parent=0 // pred_fallthru
    _
  // Predicated region
  $region22: #{fully_connected_block.1} parent=0 // pred_check
    _
  $region23: #{fully_connected_block.1} parent=0 // pred_check_branch
    %143 = sbr.rel (0) target = $region25
  $region24: #{fully_connected_block.1} parent=0 // pred_region
    _
  $region25: #{fully_connected_block.1} parent=0 // pred_fallthru
    _

</llo_original>
